<compile_context>
chip_gen: v7x
topology: tpu7x:2x2x1
jax: 0.10.0
libtpu: 0.0.40
codegen_flags: <defaults>
</compile_context>

<pallas_src>
import jax
import jax.numpy as jnp
from jax.experimental import pallas as pl
from jax.experimental.pallas import tpu as pltpu


def _round_up(n: int, m: int) -> int:
    return ((n + m - 1) // m) * m


def _mean_head_kernel(x_ref, wt_ref, b_ref, mean_ref):
    # mean = x @ W^T + b  (MXU matmul, f32 accumulate; bias broadcasts over rows)
    acc = jnp.dot(x_ref[...], wt_ref[...], preferred_element_type=jnp.float32)
    mean_ref[...] = (acc + b_ref[...].astype(jnp.float32)).astype(mean_ref.dtype)


def prepare_params(w_mean, b_mean, *, param_dtype=jnp.float32):
    """One-time conversion from torch Linear layout to the kernel layout.

    w_mean: (O, I) torch layout; b_mean: (O,).
    Returns (wt (I, O_k), b (1, O_k), output_dim).  O_k == O for small O
    (exact-width masked stores, no post-kernel slice); O_k is a 128-multiple
    only when O >= 64 (lane-dense stores are worth it there).
    Transpose / padding are paid once here, not per forward call.
    """
    O, I = w_mean.shape
    O_k = O if O < 64 else _round_up(O, 128)
    wt = jnp.zeros((I, O_k), param_dtype).at[:, :O].set(w_mean.T.astype(param_dtype))
    b = jnp.zeros((1, O_k), param_dtype).at[:, :O].set(b_mean.astype(param_dtype))
    return wt, b, O


def _choose_tile_and_vmem(B, I, O_k, itemsize):
    """Pick the batch tile TB from a VMEM budget; return (TB, vmem_limit_bytes)."""
    phys = 64 << 20  # conservative default (v7x per-TC VMEM)
    try:
        phys = int(getattr(pltpu.get_tpu_info(), "vmem_capacity_bytes", phys))
    except Exception:
        pass
    budget = min(phys // 3, 24 << 20)
    # Resident weight + bias (double-buffered by the default pipeline even with
    # a constant index_map) ...
    fixed = 2 * (I + 1) * O_k * itemsize
    # ... plus double-buffered x tile and output tile per batch row.
    per_row = 2 * (I + O_k) * itemsize
    tb = max(8, max(budget - fixed, 8 * per_row) // per_row)
    tb = min(int(tb), 2048)
    tb = (tb // 8) * 8
    if B > 8:
        # Keep >= 2 grid steps so both v7x TensorCores get work and the
        # input/output DMAs pipeline against compute.
        tb = min(tb, _round_up((B + 1) // 2, 8))
    tb = min(tb, _round_up(B, 8))
    est = fixed + per_row * tb
    vmem_limit = int(min(phys - phys // 8, max(2 * est, 16 << 20)))
    return tb, vmem_limit


def gaussian_policy_head_forward(x, wt, b, log_std_param, output_dim,
                                 std_limits=(-20.0, 2.0)):
    """x: (B, input_dim). Returns (mean, log_std), each (B, output_dim)."""
    B, I = x.shape
    I_w, O_k = wt.shape
    assert I_w == I, "weight/input width mismatch"

    itemsize = jnp.dtype(x.dtype).itemsize
    TB, vmem_limit = _choose_tile_and_vmem(B, I, O_k, itemsize)
    grid = (pl.cdiv(B, TB),)

    cost = pl.CostEstimate(
        flops=2 * B * I * O_k,
        transcendentals=0,
        bytes_accessed=(B * I + B * O_k) * itemsize
                       + (I * O_k + O_k) * jnp.dtype(wt.dtype).itemsize,
    )

    mean = pl.pallas_call(
        _mean_head_kernel,
        out_shape=jax.ShapeDtypeStruct((B, O_k), jnp.float32),
        grid=grid,
        in_specs=[
            pl.BlockSpec((TB, I), lambda i: (i, 0)),    # x tile marches over batch
            pl.BlockSpec((I, O_k), lambda i: (0, 0)),   # weight resident
            pl.BlockSpec((1, O_k), lambda i: (0, 0)),   # bias resident
        ],
        # exact (B, O_k) out_shape: ragged-tile rows (garbage x) are masked on
        # writeback and never reach HBM.
        out_specs=pl.BlockSpec((TB, O_k), lambda i: (i, 0)),
        compiler_params=pltpu.CompilerParams(
            dimension_semantics=("parallel",),          # megacore sharding on v7x
            vmem_limit_bytes=vmem_limit),
        cost_estimate=cost,
    )(x, wt, b)

    if O_k != output_dim:   # only when lane-dense padding was chosen (O >= 64)
        mean = mean[:, :output_dim]

    # Re-clamp the learnable (1, O) parameter on every call (matches the
    # per-forward torch.clamp), then broadcast lazily -- never materialized at
    # (B, O) in HBM by the kernel.
    log_std = jnp.broadcast_to(
        jnp.clip(log_std_param.astype(jnp.float32),
                 float(std_limits[0]), float(std_limits[1])),
        mean.shape)
    return mean, log_std


def init_params(key, input_dim, output_dim):
    # Deterministic synthetic init mirroring _initialize_parameters():
    # uniform(-0.003, 0.003) for mean weight/bias and the log_std parameter.
    k1, k2, k3 = jax.random.split(key, 3)
    w_mean = jax.random.uniform(k1, (output_dim, input_dim),
                                minval=-0.003, maxval=0.003, dtype=jnp.float32)
    b_mean = jax.random.uniform(k2, (output_dim,),
                                minval=-0.003, maxval=0.003, dtype=jnp.float32)
    log_std = jax.random.uniform(k3, (1, output_dim),
                                 minval=-0.003, maxval=0.003, dtype=jnp.float32)
    return w_mean, b_mean, log_std


if __name__ == "__main__":
    key = jax.random.PRNGKey(0)
    kx, kp = jax.random.split(key)

    B, INPUT_DIM, OUTPUT_DIM = 8, 32, 8
    x = jax.random.normal(kx, (B, INPUT_DIM), dtype=jnp.float32)
    w_mean, b_mean, log_std = init_params(kp, INPUT_DIM, OUTPUT_DIM)

    # One-time parameter prep (transpose + optional lane padding).
    wt, b, out_dim = prepare_params(w_mean, b_mean)

    mean, log_std_out = gaussian_policy_head_forward(
        x, wt, b, log_std, out_dim, std_limits=(-20.0, 2.0))
    jax.block_until_ready((mean, log_std_out))

    # Reference check in plain JAX (same semantics as the PyTorch forward).
    mean_ref = x @ w_mean.T + b_mean
    log_std_ref = jnp.clip(jnp.broadcast_to(log_std, mean_ref.shape), -20.0, 2.0)
    assert mean.shape == (B, OUTPUT_DIM) and log_std_out.shape == (B, OUTPUT_DIM)
    assert jnp.allclose(mean, mean_ref, atol=1e-5, rtol=1e-5)
    assert jnp.allclose(log_std_out, log_std_ref, atol=1e-6)

    print("KERNEL_OK")
</pallas_src>

<mosaic_0001>
module attributes {stable_mosaic.version = 11 : i64} {
  func.func @_mean_head_kernel(%arg0: i32, %arg1: memref<8x32xf32, #tpu.memory_space<vmem>>, %arg2: memref<32x8xf32, #tpu.memory_space<vmem>>, %arg3: memref<1x8xf32, #tpu.memory_space<vmem>>, %arg4: memref<8x8xf32, #tpu.memory_space<vmem>>) attributes {dimension_semantics = [#tpu.dimension_semantics<parallel>], iteration_bounds = array<i64: 1>, scalar_prefetch = 0 : i64, scratch_operands = 0 : i64, tpu.core_type = #tpu.core_type<tc>, window_params = [{transform_indices = @transform_0, window_bounds = array<i64: 8, 32>}, {pipeline_mode = #tpu.pipeline_mode<synchronous>, transform_indices = @transform_1, window_bounds = array<i64: 32, 8>}, {pipeline_mode = #tpu.pipeline_mode<synchronous>, transform_indices = @transform_2, window_bounds = array<i64: 1, 8>}, {transform_indices = @transform_3, window_bounds = array<i64: 8, 8>}]} {
    %c0 = arith.constant 0 : index
    %c0_0 = arith.constant 0 : index
    %0 = vector.load %arg1[%c0, %c0_0] : memref<8x32xf32, #tpu.memory_space<vmem>>, vector<8x32xf32>
    %c0_1 = arith.constant 0 : index
    %c0_2 = arith.constant 0 : index
    %1 = vector.load %arg2[%c0_1, %c0_2] : memref<32x8xf32, #tpu.memory_space<vmem>>, vector<32x8xf32>
    %cst = arith.constant dense<0.000000e+00> : vector<8x8xf32>
    %2 = tpu.matmul %0, %1, %cst {dimension_numbers = #tpu.dot_dimension_numbers<[1], [0], [0], [1], [0, 0, 1, 1], [], []>} : vector<8x32xf32>, vector<32x8xf32>, vector<8x8xf32> -> vector<8x8xf32>
    %c0_3 = arith.constant 0 : index
    %c0_4 = arith.constant 0 : index
    %3 = vector.load %arg3[%c0_3, %c0_4] : memref<1x8xf32, #tpu.memory_space<vmem>>, vector<1x8xf32>
    %4 = vector.broadcast %3 : vector<1x8xf32> to vector<8x8xf32>
    %5 = arith.addf %2, %4 : vector<8x8xf32>
    %c0_5 = arith.constant 0 : index
    %c0_6 = arith.constant 0 : index
    %6 = vector.load %arg4[%c0_5, %c0_6] : memref<8x8xf32, #tpu.memory_space<vmem>>, vector<8x8xf32>
    tpu.vector_store %arg4[%c0_5, %c0_6], %5 {strides = array<i32>} : memref<8x8xf32, #tpu.memory_space<vmem>>, vector<8x8xf32>,
    return
  }
  func.func @transform_0(%arg0: i32) -> (i32, i32) {
    %c0_i32 = arith.constant 0 : i32
    %c0_i32_0 = arith.constant 0 : i32
    return %arg0, %c0_i32 : i32, i32
  }
  func.func @transform_1(%arg0: i32) -> (i32, i32) {
    %c0_i32 = arith.constant 0 : i32
    %c0_i32_0 = arith.constant 0 : i32
    %c0_i32_1 = arith.constant 0 : i32
    return %c0_i32, %c0_i32_0 : i32, i32
  }
  func.func @transform_2(%arg0: i32) -> (i32, i32) {
    %c0_i32 = arith.constant 0 : i32
    %c0_i32_0 = arith.constant 0 : i32
    %c0_i32_1 = arith.constant 0 : i32
    return %c0_i32, %c0_i32_0 : i32, i32
  }
  func.func @transform_3(%arg0: i32) -> (i32, i32) {
    %c0_i32 = arith.constant 0 : i32
    %c0_i32_0 = arith.constant 0 : i32
    return %arg0, %c0_i32 : i32, i32
  }
}

</mosaic_0001>

<llo_original>
// kernel: tpu_custom_call.1
$region0: #{tpu_custom_call.1}
  #allocation0 [shape = 'u32[]', space=smem, size = 0x4, offset = 0x4, fixed_abs, tag = 'smem constant byte address 0x4 - core index']
  #allocation1 [shape = 'u32[144,128]{1,0:T(1,128)}', space=vmem, size = 0x12000, scoped, tag = 'internal scratch']
  %s0 = inlined_call_operand.vmem [shape: f32[8,32], index: 0, kind: input, shape index: {}]
  %s1 = inlined_call_operand.vmem [shape: f32[32,8], index: 1, kind: input, shape index: {}]
  %s2 = inlined_call_operand.vmem [shape: f32[1,8], index: 2, kind: input, shape index: {}]
  %s3 = inlined_call_operand.hbm [shape: f32[8,8], index: 3, kind: output, shape index: {}]
  %s4 = sld [smem:[#allocation0]]
  $region22: #{tpu_custom_call.1} parent=0
    _
  %s6 = ssub.s32 1, %s4
  %s7 = scalar_select 0, %s6, %s4
  $region1: #{tpu_custom_call.1} parent=0
    #allocation2 [shape = 'u8[4096]{0}', space=vmem, size = 0x1000, scoped, tag = 'output window, operand 0, single buffered']
    #allocation3 [shape = 's32[1]{0}', space=sflag, size = 0x4, scoped, tag = 'scoped memory for tpu_custom_call.1']
    %8 = vsyncpa [#allocation3], 0
    // Predicated region
    $region2: #{tpu_custom_call.1} parent=1 // pred_check
      _
    $region3: #{tpu_custom_call.1} parent=1 // pred_check_branch
      %10 = sbr.rel (0) target = $region5
    $region4: #{tpu_custom_call.1} parent=1 // pred_region
      _
    $region5: #{tpu_custom_call.1} parent=1 // pred_fallthru
      _
    // Predicated region
    $region6: #{tpu_custom_call.1} parent=1 // pred_check
      _
    $region7: #{tpu_custom_call.1} parent=1 // pred_check_branch
      %12 = sbr.rel (0) target = $region9
    $region8: #{tpu_custom_call.1} parent=1 // pred_region
      _
    $region9: #{tpu_custom_call.1} parent=1 // pred_fallthru
      _
    // Predicated region
    $region10: #{tpu_custom_call.1} parent=1 // pred_check
      _
    $region11: #{tpu_custom_call.1} parent=1 // pred_check_branch
      %14 = sbr.rel (0) target = $region13
    $region12: #{tpu_custom_call.1} parent=1 // pred_region
      _
    $region13: #{tpu_custom_call.1} parent=1 // pred_fallthru
      _
    %v15 = vld [vmem:[%s0] sm:$0xff]
    %v16 = vld [vmem:[%s1] sm:$0xff]
    %v17 = vld [vmem:[%s1 + $0x8] sm:$0xff]
    %v18 = vld [vmem:[%s1 + $0x10] sm:$0xff]
    %v19 = vld [vmem:[%s1 + $0x18] sm:$0xff]
    %v20 = vld [vmem:[%s2] sm:$0x1]
    %v22 = vlaneseq
    %v23 = vshrl.u32 %v22, 7
    %v24 = vsub.s32 0, %v23
    %v25 = vrot.slane %v20, %v24
    %vm27 = vcmask 261120
    %v29 = vsel %vm27, %v15, 0
    %31 = vmatprep.subr.mxu0 0.0
    %32 = vmatpush1.msra.mxu0 %v16
    %33 = vmatprep.subr.mxu0 0.0
    %34 = vmatpush1.msra.mxu0 %v17
    %35 = vmatprep.subr.mxu0 0.0
    %36 = vmatpush1.msra.mxu0 %v18
    %37 = vmatprep.subr.mxu0 0.0
    %38 = vmatpush1.msra.mxu0 %v19
    %39 = vmatprep.subr.mxu0 0.0
    %40 = vmatpush1.msra.mxu0 0.0
    %41 = vmatprep.subr.mxu0 0.0
    %42 = vmatpush1.msra.mxu0 0.0
    %43 = vmatprep.subr.mxu0 0.0
    %44 = vmatpush1.msra.mxu0 0.0
    %45 = vmatprep.subr.mxu0 0.0
    %46 = vmatpush1.msra.mxu0 0.0
    %47 = vmatprep.subr.mxu0 0.0
    %48 = vmatpush1.msra.mxu0 0.0
    %49 = vmatprep.subr.mxu0 0.0
    %50 = vmatpush1.msra.mxu0 0.0
    %51 = vmatprep.subr.mxu0 0.0
    %52 = vmatpush1.msra.mxu0 0.0
    %53 = vmatprep.subr.mxu0 0.0
    %54 = vmatpush1.msra.mxu0 0.0
    %55 = vmatprep.subr.mxu0 0.0
    %56 = vmatpush1.msra.mxu0 0.0
    %57 = vmatprep.subr.mxu0 0.0
    %58 = vmatpush1.msra.mxu0 0.0
    %59 = vmatprep.subr.mxu0 0.0
    %60 = vmatpush1.msra.mxu0 0.0
    %61 = vmatprep.subr.mxu0 0.0
    %62 = vmatpush1.msra.mxu0 0.0
    %63 = vmatprep.subr.mxu0 0.0
    %64 = vmatpush1.msra.mxu0 0.0
    %65 = vmatprep.subr.mxu0 0.0
    %66 = vmatpush1.msra.mxu0 0.0
    %67 = vmatprep.subr.mxu0 0.0
    %68 = vmatpush1.msra.mxu0 0.0
    %69 = vmatprep.subr.mxu0 0.0
    %70 = vmatpush1.msra.mxu0 0.0
    %71 = vmatprep.subr.mxu0 0.0
    %72 = vmatpush1.msra.mxu0 0.0
    %73 = vmatprep.subr.mxu0 0.0
    %74 = vmatpush1.msra.mxu0 0.0
    %75 = vmatprep.subr.mxu0 0.0
    %76 = vmatpush1.msra.mxu0 0.0
    %77 = vmatprep.subr.mxu0 0.0
    %78 = vmatpush1.msra.mxu0 0.0
    %79 = vmatprep.subr.mxu0 0.0
    %80 = vmatpush1.msra.mxu0 0.0
    %81 = vmatprep.subr.mxu0 0.0
    %82 = vmatpush1.msra.mxu0 0.0
    %83 = vmatprep.subr.mxu0 0.0
    %84 = vmatpush1.msra.mxu0 0.0
    %85 = vmatprep.subr.mxu0 0.0
    %86 = vmatpush1.msra.mxu0 0.0
    %87 = vmatprep.subr.mxu0 0.0
    %88 = vmatpush1.msra.mxu0 0.0
    %89 = vmatprep.subr.mxu0 0.0
    %90 = vmatpush1.msra.mxu0 0.0
    %91 = vmatprep.subr.mxu0 0.0
    %92 = vmatpush1.msra.mxu0 0.0
    %93 = vmatprep.subr.mxu0 0.0
    %94 = vmatpush1.msra.mxu0 0.0
    %95 = vmatprep.mubr.f32.mxu0 0.0
    %96 = vmatmul.mubr.f32.gmra.mrb[0].mxu0 %v29
    %v97 = vpop.f32.mrb[0].mxu0
    %v98 = vadd.f32 %v25, %v97
    %v99 = vpop.f32.mrb[0].mxu0
    %100 = vdwg.mxu0
    %vm101 = vcmask 64512
    %102 = vst.msk [vmem:[#allocation2] sm:$0xff] %vm101, %v98
    // Predicated region
    $region14: #{tpu_custom_call.1} parent=1 // pred_check
      _
    $region15: #{tpu_custom_call.1} parent=1 // pred_check_branch
      %104 = sbr.rel (0) target = $region17
    $region16: #{tpu_custom_call.1} parent=1 // pred_region
      %s106 = ssub.s32 128, 128
      %107 = vsyncadd [#allocation3], %s106
      %s109 = sshll.u32 [#allocation2], 4
      %s110 = int_to_ptr.vmem [resolvable:$true] %s109
      %112 = dma.vmem_to_hbm [thread:$0]  %s110, 128, %s3, [#allocation3]
    $region17: #{tpu_custom_call.1} parent=1 // pred_fallthru
      _
    // Predicated region
    $region18: #{tpu_custom_call.1} parent=1 // pred_check
      _
    $region19: #{tpu_custom_call.1} parent=1 // pred_check_branch
      %114 = sbr.rel (0) target = $region21
    $region20: #{tpu_custom_call.1} parent=1 // pred_region
      %115 = dma.done [#allocation3], 128
    $region21: #{tpu_custom_call.1} parent=1 // pred_fallthru
      _
    %116 = vsyncpa [#allocation3], 1

</llo_original>
